<compile_context>
chip_gen: v6e
topology: v6e:2x2x1
jax: 0.10.0
libtpu: 0.0.40
codegen_flags: <defaults>
</compile_context>

<pallas_src>
import functools

import jax
import jax.numpy as jnp
from jax.experimental import pallas as pl
from jax.experimental.pallas import tpu as pltpu


def _cdiv(a, b):
    return (a + b - 1) // b


def _round_up(x, m):
    return _cdiv(x, m) * m


def _mbd_kernel(m_ref, o_ref, *, N, TK, B, C):
    """One grid step handles TK consecutive batch rows (the `k` axis).

    m_ref: (N_pad, C*B)  M = x @ T for all rows, lane-dense (out_size fastest)
    o_ref: (TK, B)       output rows for this k-block
    """
    CB = C * B
    i = pl.program_id(0)

    # Tile-aligned slice of the k-block rows (TK is a multiple of 8).
    row0 = pl.multiple_of(i * TK, TK)
    m_k = m_ref[pl.ds(row0, TK), :]                        # (TK, CB)

    def reduce_over_c(diff):
        # Sum over c (lane stride B): static lane-slice adds.  Exact f32 and
        # lowers everywhere; swap in an MXU 0/1 summation-matrix matmul only
        # if profiling shows the XLU/VPU slot binding on v6e/v7x.
        r = diff[:, 0:B]
        for c in range(1, C):
            r = r + diff[:, c * B:(c + 1) * B]
        return r                                           # (TK, B)

    def c_col(j):
        # c[k, j] = exp(-sum_c |M[k, b, c] - M[j, b, c]|) for the TK k-rows.
        mj = m_ref[pl.ds(j, 1), :]                         # (1, CB) -> broadcast
        diff = jnp.abs(m_k - mj)                           # (TK, CB)  VPU
        return jnp.exp(-reduce_over_c(diff))               # (TK, B)   EUP

    # Row sum over j = 0 .. N-2; working set stays O(TK * CB).
    unroll = True if N <= 32 else 4
    acc = jax.lax.fori_loop(
        0, N - 1, lambda j, a: a + c_col(j),
        jnp.zeros((TK, B), jnp.float32), unroll=unroll)

    # Last column computed once, reused for both row sum and the correction.
    c_last = c_col(N - 1)
    gk = row0 + jax.lax.broadcasted_iota(jnp.int32, (TK, B), 0)
    correction = jnp.where(gk == 0, 1.0, c_last)           # 1 == exp(0) self term
    o_ref[...] = (acc + c_last - correction).astype(o_ref.dtype)


def flatten_T(T_param):
    """(feat_num, out_size, row_size) -> (feat_num, row_size*out_size).

    out_size is the fastest (lane) axis.  Done ONCE when the parameter is
    created/updated — hoisted out of the per-forward-call path.
    """
    F, B, C = T_param.shape
    return jnp.transpose(T_param, (0, 2, 1)).reshape(F, C * B)


def minibatch_discrimination(x, t_flat, out_size, row_size):
    """x: (N, feat_num) f32; t_flat: (feat_num, row_size*out_size) from
    flatten_T.  Returns (N, out_size) f32, matching the PyTorch module."""
    N, F = x.shape
    B, C = out_size, row_size
    CB = C * B
    assert t_flat.shape == (F, CB)

    # Megacore-aware k-blocking: at least 2 blocks once N >= 16 so v7x's
    # second TensorCore gets work under dimension_semantics=("parallel",).
    if N <= 8:
        TK = 8
    else:
        TK = min(_round_up(_cdiv(N, 2), 8), 128)
    N_pad = _round_up(N, TK)
    num_blocks = N_pad // TK

    # Hoisted: M = x @ T computed once, outside the kernel (padded rows = 0;
    # they are never read as j (loop bound is N) and are sliced off as k).
    m = jnp.dot(x, t_flat)
    if N_pad != N:
        m = jnp.pad(m, ((0, N_pad - N), (0, 0)))

    kernel = functools.partial(_mbd_kernel, N=N, TK=TK, B=B, C=C)

    # Only raise the scoped VMEM limit when the resident M block needs it.
    resident_bytes = 4 * (2 * N_pad * CB + 2 * TK * B)
    compiler_kwargs = dict(dimension_semantics=("parallel",))
    if resident_bytes > (16 << 20):
        compiler_kwargs["vmem_limit_bytes"] = min(
            resident_bytes + (4 << 20), 100 << 20)

    out = pl.pallas_call(
        kernel,
        out_shape=jax.ShapeDtypeStruct((N_pad, B), jnp.float32),
        grid_spec=pltpu.PrefetchScalarGridSpec(
            num_scalar_prefetch=0,
            grid=(num_blocks,),
            in_specs=[pl.BlockSpec((N_pad, CB), lambda i: (0, 0))],
            out_specs=pl.BlockSpec((TK, B), lambda i: (i, 0)),
        ),
        compiler_params=pltpu.CompilerParams(**compiler_kwargs),
    )(m)
    return out[:N]


def _reference(x, T_param):
    """Pure-JAX port of the PyTorch forward, used only to sanity-check."""
    N, F = x.shape
    _, B, C = T_param.shape
    M = (x @ T_param.reshape(F, B * C)).reshape(N, B, C)
    out = []
    for k in range(N):
        c = jnp.exp(-jnp.sum(jnp.abs(M[k] - M), axis=2))  # (N, B)
        if k != 0 and k != N - 1:
            out.append(jnp.sum(c[0:k], axis=0) + jnp.sum(c[k:-1], axis=0))
        elif k == 0:
            out.append(jnp.sum(c[1:], axis=0))
        else:
            out.append(jnp.sum(c[0:N - 1], axis=0))
    return jnp.stack(out, axis=0)


if __name__ == "__main__":
    # Module hyper-params (small, consistent with the PyTorch __init__).
    batch_size = 8      # N
    feat_num = 32       # input feature dim
    out_size = 16
    row_size = 8        # row_size * out_size = 128 lanes exactly

    key = jax.random.PRNGKey(0)
    kx, kt = jax.random.split(key)

    x = jax.random.normal(kx, (batch_size, feat_num), dtype=jnp.float32)

    # reset_parameters(): stddev = 1/feat_num; T ~ Uniform(stddev, 1)
    stddev = 1.0 / feat_num
    T_param = jax.random.uniform(
        kt, (feat_num, out_size, row_size), dtype=jnp.float32,
        minval=stddev, maxval=1.0)

    t_flat = flatten_T(T_param)     # one-time parameter prep (hoisted)
    out = minibatch_discrimination(x, t_flat, out_size, row_size)
    out = jax.block_until_ready(out)

    ref = _reference(x, T_param)
    assert out.shape == (batch_size, out_size)
    assert jnp.allclose(out, ref, rtol=1e-5, atol=1e-5), (
        f"max abs err {jnp.max(jnp.abs(out - ref))}")

    print("KERNEL_OK")
</pallas_src>

<mosaic_0001>
module attributes {stable_mosaic.version = 11 : i64} {
  func.func @_mbd_kernel(%arg0: i32, %arg1: memref<8x128xf32, #tpu.memory_space<vmem>>, %arg2: memref<8x16xf32, #tpu.memory_space<vmem>>) attributes {dimension_semantics = [#tpu.dimension_semantics<parallel>], iteration_bounds = array<i64: 1>, scalar_prefetch = 0 : i64, scratch_operands = 0 : i64, tpu.core_type = #tpu.core_type<tc>, window_params = [{pipeline_mode = #tpu.pipeline_mode<synchronous>, transform_indices = @transform_0, window_bounds = array<i64: 8, 128>}, {transform_indices = @transform_1, window_bounds = array<i64: 8, 16>}]} {
    %c8_i32 = arith.constant 8 : i32
    %0 = arith.muli %arg0, %c8_i32 : i32
    %1 = tpu.assume_multiple %0, 8 : i32
    %2 = arith.index_cast %1 : i32 to index
    %c0 = arith.constant 0 : index
    %3 = vector.load %arg1[%2, %c0] : memref<8x128xf32, #tpu.memory_space<vmem>>, vector<8x128xf32>
    %cst = arith.constant 0.000000e+00 : f32
    %4 = vector.broadcast %cst : f32 to vector<8x16xf32>
    %c0_i32 = arith.constant 0 : i32
    %5 = arith.index_cast %c0_i32 : i32 to index
    %c0_0 = arith.constant 0 : index
    %6 = vector.load %arg1[%5, %c0_0] : memref<8x128xf32, #tpu.memory_space<vmem>>, vector<1x128xf32>
    %7 = vector.broadcast %6 : vector<1x128xf32> to vector<8x128xf32>
    %8 = arith.subf %3, %7 : vector<8x128xf32>
    %9 = math.absf %8 : vector<8x128xf32>
    %10 = vector.extract_strided_slice %9 {offsets = [0, 0], sizes = [8, 16], strides = [1, 1]} : vector<8x128xf32> to vector<8x16xf32>
    %11 = vector.extract_strided_slice %9 {offsets = [0, 16], sizes = [8, 16], strides = [1, 1]} : vector<8x128xf32> to vector<8x16xf32>
    %12 = arith.addf %10, %11 : vector<8x16xf32>
    %13 = vector.extract_strided_slice %9 {offsets = [0, 32], sizes = [8, 16], strides = [1, 1]} : vector<8x128xf32> to vector<8x16xf32>
    %14 = arith.addf %12, %13 : vector<8x16xf32>
    %15 = vector.extract_strided_slice %9 {offsets = [0, 48], sizes = [8, 16], strides = [1, 1]} : vector<8x128xf32> to vector<8x16xf32>
    %16 = arith.addf %14, %15 : vector<8x16xf32>
    %17 = vector.extract_strided_slice %9 {offsets = [0, 64], sizes = [8, 16], strides = [1, 1]} : vector<8x128xf32> to vector<8x16xf32>
    %18 = arith.addf %16, %17 : vector<8x16xf32>
    %19 = vector.extract_strided_slice %9 {offsets = [0, 80], sizes = [8, 16], strides = [1, 1]} : vector<8x128xf32> to vector<8x16xf32>
    %20 = arith.addf %18, %19 : vector<8x16xf32>
    %21 = vector.extract_strided_slice %9 {offsets = [0, 96], sizes = [8, 16], strides = [1, 1]} : vector<8x128xf32> to vector<8x16xf32>
    %22 = arith.addf %20, %21 : vector<8x16xf32>
    %23 = vector.extract_strided_slice %9 {offsets = [0, 112], sizes = [8, 16], strides = [1, 1]} : vector<8x128xf32> to vector<8x16xf32>
    %24 = arith.addf %22, %23 : vector<8x16xf32>
    %cst_1 = arith.constant 0.000000e+00 : f32
    %25 = vector.broadcast %cst_1 : f32 to vector<8x16xf32>
    %26 = arith.subf %25, %24 : vector<8x16xf32>
    %27 = math.exp %26 : vector<8x16xf32>
    %28 = arith.addf %4, %27 : vector<8x16xf32>
    %c1_i32 = arith.constant 1 : i32
    %29 = arith.index_cast %c1_i32 : i32 to index
    %c0_2 = arith.constant 0 : index
    %30 = vector.load %arg1[%29, %c0_2] : memref<8x128xf32, #tpu.memory_space<vmem>>, vector<1x128xf32>
    %31 = vector.broadcast %30 : vector<1x128xf32> to vector<8x128xf32>
    %32 = arith.subf %3, %31 : vector<8x128xf32>
    %33 = math.absf %32 : vector<8x128xf32>
    %34 = vector.extract_strided_slice %33 {offsets = [0, 0], sizes = [8, 16], strides = [1, 1]} : vector<8x128xf32> to vector<8x16xf32>
    %35 = vector.extract_strided_slice %33 {offsets = [0, 16], sizes = [8, 16], strides = [1, 1]} : vector<8x128xf32> to vector<8x16xf32>
    %36 = arith.addf %34, %35 : vector<8x16xf32>
    %37 = vector.extract_strided_slice %33 {offsets = [0, 32], sizes = [8, 16], strides = [1, 1]} : vector<8x128xf32> to vector<8x16xf32>
    %38 = arith.addf %36, %37 : vector<8x16xf32>
    %39 = vector.extract_strided_slice %33 {offsets = [0, 48], sizes = [8, 16], strides = [1, 1]} : vector<8x128xf32> to vector<8x16xf32>
    %40 = arith.addf %38, %39 : vector<8x16xf32>
    %41 = vector.extract_strided_slice %33 {offsets = [0, 64], sizes = [8, 16], strides = [1, 1]} : vector<8x128xf32> to vector<8x16xf32>
    %42 = arith.addf %40, %41 : vector<8x16xf32>
    %43 = vector.extract_strided_slice %33 {offsets = [0, 80], sizes = [8, 16], strides = [1, 1]} : vector<8x128xf32> to vector<8x16xf32>
    %44 = arith.addf %42, %43 : vector<8x16xf32>
    %45 = vector.extract_strided_slice %33 {offsets = [0, 96], sizes = [8, 16], strides = [1, 1]} : vector<8x128xf32> to vector<8x16xf32>
    %46 = arith.addf %44, %45 : vector<8x16xf32>
    %47 = vector.extract_strided_slice %33 {offsets = [0, 112], sizes = [8, 16], strides = [1, 1]} : vector<8x128xf32> to vector<8x16xf32>
    %48 = arith.addf %46, %47 : vector<8x16xf32>
    %cst_3 = arith.constant 0.000000e+00 : f32
    %49 = vector.broadcast %cst_3 : f32 to vector<8x16xf32>
    %50 = arith.subf %49, %48 : vector<8x16xf32>
    %51 = math.exp %50 : vector<8x16xf32>
    %52 = arith.addf %28, %51 : vector<8x16xf32>
    %c2_i32 = arith.constant 2 : i32
    %53 = arith.index_cast %c2_i32 : i32 to index
    %c0_4 = arith.constant 0 : index
    %54 = vector.load %arg1[%53, %c0_4] : memref<8x128xf32, #tpu.memory_space<vmem>>, vector<1x128xf32>
    %55 = vector.broadcast %54 : vector<1x128xf32> to vector<8x128xf32>
    %56 = arith.subf %3, %55 : vector<8x128xf32>
    %57 = math.absf %56 : vector<8x128xf32>
    %58 = vector.extract_strided_slice %57 {offsets = [0, 0], sizes = [8, 16], strides = [1, 1]} : vector<8x128xf32> to vector<8x16xf32>
    %59 = vector.extract_strided_slice %57 {offsets = [0, 16], sizes = [8, 16], strides = [1, 1]} : vector<8x128xf32> to vector<8x16xf32>
    %60 = arith.addf %58, %59 : vector<8x16xf32>
    %61 = vector.extract_strided_slice %57 {offsets = [0, 32], sizes = [8, 16], strides = [1, 1]} : vector<8x128xf32> to vector<8x16xf32>
    %62 = arith.addf %60, %61 : vector<8x16xf32>
    %63 = vector.extract_strided_slice %57 {offsets = [0, 48], sizes = [8, 16], strides = [1, 1]} : vector<8x128xf32> to vector<8x16xf32>
    %64 = arith.addf %62, %63 : vector<8x16xf32>
    %65 = vector.extract_strided_slice %57 {offsets = [0, 64], sizes = [8, 16], strides = [1, 1]} : vector<8x128xf32> to vector<8x16xf32>
    %66 = arith.addf %64, %65 : vector<8x16xf32>
    %67 = vector.extract_strided_slice %57 {offsets = [0, 80], sizes = [8, 16], strides = [1, 1]} : vector<8x128xf32> to vector<8x16xf32>
    %68 = arith.addf %66, %67 : vector<8x16xf32>
    %69 = vector.extract_strided_slice %57 {offsets = [0, 96], sizes = [8, 16], strides = [1, 1]} : vector<8x128xf32> to vector<8x16xf32>
    %70 = arith.addf %68, %69 : vector<8x16xf32>
    %71 = vector.extract_strided_slice %57 {offsets = [0, 112], sizes = [8, 16], strides = [1, 1]} : vector<8x128xf32> to vector<8x16xf32>
    %72 = arith.addf %70, %71 : vector<8x16xf32>
    %cst_5 = arith.constant 0.000000e+00 : f32
    %73 = vector.broadcast %cst_5 : f32 to vector<8x16xf32>
    %74 = arith.subf %73, %72 : vector<8x16xf32>
    %75 = math.exp %74 : vector<8x16xf32>
    %76 = arith.addf %52, %75 : vector<8x16xf32>
    %c3_i32 = arith.constant 3 : i32
    %77 = arith.index_cast %c3_i32 : i32 to index
    %c0_6 = arith.constant 0 : index
    %78 = vector.load %arg1[%77, %c0_6] : memref<8x128xf32, #tpu.memory_space<vmem>>, vector<1x128xf32>
    %79 = vector.broadcast %78 : vector<1x128xf32> to vector<8x128xf32>
    %80 = arith.subf %3, %79 : vector<8x128xf32>
    %81 = math.absf %80 : vector<8x128xf32>
    %82 = vector.extract_strided_slice %81 {offsets = [0, 0], sizes = [8, 16], strides = [1, 1]} : vector<8x128xf32> to vector<8x16xf32>
    %83 = vector.extract_strided_slice %81 {offsets = [0, 16], sizes = [8, 16], strides = [1, 1]} : vector<8x128xf32> to vector<8x16xf32>
    %84 = arith.addf %82, %83 : vector<8x16xf32>
    %85 = vector.extract_strided_slice %81 {offsets = [0, 32], sizes = [8, 16], strides = [1, 1]} : vector<8x128xf32> to vector<8x16xf32>
    %86 = arith.addf %84, %85 : vector<8x16xf32>
    %87 = vector.extract_strided_slice %81 {offsets = [0, 48], sizes = [8, 16], strides = [1, 1]} : vector<8x128xf32> to vector<8x16xf32>
    %88 = arith.addf %86, %87 : vector<8x16xf32>
    %89 = vector.extract_strided_slice %81 {offsets = [0, 64], sizes = [8, 16], strides = [1, 1]} : vector<8x128xf32> to vector<8x16xf32>
    %90 = arith.addf %88, %89 : vector<8x16xf32>
    %91 = vector.extract_strided_slice %81 {offsets = [0, 80], sizes = [8, 16], strides = [1, 1]} : vector<8x128xf32> to vector<8x16xf32>
    %92 = arith.addf %90, %91 : vector<8x16xf32>
    %93 = vector.extract_strided_slice %81 {offsets = [0, 96], sizes = [8, 16], strides = [1, 1]} : vector<8x128xf32> to vector<8x16xf32>
    %94 = arith.addf %92, %93 : vector<8x16xf32>
    %95 = vector.extract_strided_slice %81 {offsets = [0, 112], sizes = [8, 16], strides = [1, 1]} : vector<8x128xf32> to vector<8x16xf32>
    %96 = arith.addf %94, %95 : vector<8x16xf32>
    %cst_7 = arith.constant 0.000000e+00 : f32
    %97 = vector.broadcast %cst_7 : f32 to vector<8x16xf32>
    %98 = arith.subf %97, %96 : vector<8x16xf32>
    %99 = math.exp %98 : vector<8x16xf32>
    %100 = arith.addf %76, %99 : vector<8x16xf32>
    %c4_i32 = arith.constant 4 : i32
    %101 = arith.index_cast %c4_i32 : i32 to index
    %c0_8 = arith.constant 0 : index
    %102 = vector.load %arg1[%101, %c0_8] : memref<8x128xf32, #tpu.memory_space<vmem>>, vector<1x128xf32>
    %103 = vector.broadcast %102 : vector<1x128xf32> to vector<8x128xf32>
    %104 = arith.subf %3, %103 : vector<8x128xf32>
    %105 = math.absf %104 : vector<8x128xf32>
    %106 = vector.extract_strided_slice %105 {offsets = [0, 0], sizes = [8, 16], strides = [1, 1]} : vector<8x128xf32> to vector<8x16xf32>
    %107 = vector.extract_strided_slice %105 {offsets = [0, 16], sizes = [8, 16], strides = [1, 1]} : vector<8x128xf32> to vector<8x16xf32>
    %108 = arith.addf %106, %107 : vector<8x16xf32>
    %109 = vector.extract_strided_slice %105 {offsets = [0, 32], sizes = [8, 16], strides = [1, 1]} : vector<8x128xf32> to vector<8x16xf32>
    %110 = arith.addf %108, %109 : vector<8x16xf32>
    %111 = vector.extract_strided_slice %105 {offsets = [0, 48], sizes = [8, 16], strides = [1, 1]} : vector<8x128xf32> to vector<8x16xf32>
    %112 = arith.addf %110, %111 : vector<8x16xf32>
    %113 = vector.extract_strided_slice %105 {offsets = [0, 64], sizes = [8, 16], strides = [1, 1]} : vector<8x128xf32> to vector<8x16xf32>
    %114 = arith.addf %112, %113 : vector<8x16xf32>
    %115 = vector.extract_strided_slice %105 {offsets = [0, 80], sizes = [8, 16], strides = [1, 1]} : vector<8x128xf32> to vector<8x16xf32>
    %116 = arith.addf %114, %115 : vector<8x16xf32>
    %117 = vector.extract_strided_slice %105 {offsets = [0, 96], sizes = [8, 16], strides = [1, 1]} : vector<8x128xf32> to vector<8x16xf32>
    %118 = arith.addf %116, %117 : vector<8x16xf32>
    %119 = vector.extract_strided_slice %105 {offsets = [0, 112], sizes = [8, 16], strides = [1, 1]} : vector<8x128xf32> to vector<8x16xf32>
    %120 = arith.addf %118, %119 : vector<8x16xf32>
    %cst_9 = arith.constant 0.000000e+00 : f32
    %121 = vector.broadcast %cst_9 : f32 to vector<8x16xf32>
    %122 = arith.subf %121, %120 : vector<8x16xf32>
    %123 = math.exp %122 : vector<8x16xf32>
    %124 = arith.addf %100, %123 : vector<8x16xf32>
    %c5_i32 = arith.constant 5 : i32
    %125 = arith.index_cast %c5_i32 : i32 to index
    %c0_10 = arith.constant 0 : index
    %126 = vector.load %arg1[%125, %c0_10] : memref<8x128xf32, #tpu.memory_space<vmem>>, vector<1x128xf32>
    %127 = vector.broadcast %126 : vector<1x128xf32> to vector<8x128xf32>
    %128 = arith.subf %3, %127 : vector<8x128xf32>
    %129 = math.absf %128 : vector<8x128xf32>
    %130 = vector.extract_strided_slice %129 {offsets = [0, 0], sizes = [8, 16], strides = [1, 1]} : vector<8x128xf32> to vector<8x16xf32>
    %131 = vector.extract_strided_slice %129 {offsets = [0, 16], sizes = [8, 16], strides = [1, 1]} : vector<8x128xf32> to vector<8x16xf32>
    %132 = arith.addf %130, %131 : vector<8x16xf32>
    %133 = vector.extract_strided_slice %129 {offsets = [0, 32], sizes = [8, 16], strides = [1, 1]} : vector<8x128xf32> to vector<8x16xf32>
    %134 = arith.addf %132, %133 : vector<8x16xf32>
    %135 = vector.extract_strided_slice %129 {offsets = [0, 48], sizes = [8, 16], strides = [1, 1]} : vector<8x128xf32> to vector<8x16xf32>
    %136 = arith.addf %134, %135 : vector<8x16xf32>
    %137 = vector.extract_strided_slice %129 {offsets = [0, 64], sizes = [8, 16], strides = [1, 1]} : vector<8x128xf32> to vector<8x16xf32>
    %138 = arith.addf %136, %137 : vector<8x16xf32>
    %139 = vector.extract_strided_slice %129 {offsets = [0, 80], sizes = [8, 16], strides = [1, 1]} : vector<8x128xf32> to vector<8x16xf32>
    %140 = arith.addf %138, %139 : vector<8x16xf32>
    %141 = vector.extract_strided_slice %129 {offsets = [0, 96], sizes = [8, 16], strides = [1, 1]} : vector<8x128xf32> to vector<8x16xf32>
    %142 = arith.addf %140, %141 : vector<8x16xf32>
    %143 = vector.extract_strided_slice %129 {offsets = [0, 112], sizes = [8, 16], strides = [1, 1]} : vector<8x128xf32> to vector<8x16xf32>
    %144 = arith.addf %142, %143 : vector<8x16xf32>
    %cst_11 = arith.constant 0.000000e+00 : f32
    %145 = vector.broadcast %cst_11 : f32 to vector<8x16xf32>
    %146 = arith.subf %145, %144 : vector<8x16xf32>
    %147 = math.exp %146 : vector<8x16xf32>
    %148 = arith.addf %124, %147 : vector<8x16xf32>
    %c6_i32 = arith.constant 6 : i32
    %149 = arith.index_cast %c6_i32 : i32 to index
    %c0_12 = arith.constant 0 : index
    %150 = vector.load %arg1[%149, %c0_12] : memref<8x128xf32, #tpu.memory_space<vmem>>, vector<1x128xf32>
    %151 = vector.broadcast %150 : vector<1x128xf32> to vector<8x128xf32>
    %152 = arith.subf %3, %151 : vector<8x128xf32>
    %153 = math.absf %152 : vector<8x128xf32>
    %154 = vector.extract_strided_slice %153 {offsets = [0, 0], sizes = [8, 16], strides = [1, 1]} : vector<8x128xf32> to vector<8x16xf32>
    %155 = vector.extract_strided_slice %153 {offsets = [0, 16], sizes = [8, 16], strides = [1, 1]} : vector<8x128xf32> to vector<8x16xf32>
    %156 = arith.addf %154, %155 : vector<8x16xf32>
    %157 = vector.extract_strided_slice %153 {offsets = [0, 32], sizes = [8, 16], strides = [1, 1]} : vector<8x128xf32> to vector<8x16xf32>
    %158 = arith.addf %156, %157 : vector<8x16xf32>
    %159 = vector.extract_strided_slice %153 {offsets = [0, 48], sizes = [8, 16], strides = [1, 1]} : vector<8x128xf32> to vector<8x16xf32>
    %160 = arith.addf %158, %159 : vector<8x16xf32>
    %161 = vector.extract_strided_slice %153 {offsets = [0, 64], sizes = [8, 16], strides = [1, 1]} : vector<8x128xf32> to vector<8x16xf32>
    %162 = arith.addf %160, %161 : vector<8x16xf32>
    %163 = vector.extract_strided_slice %153 {offsets = [0, 80], sizes = [8, 16], strides = [1, 1]} : vector<8x128xf32> to vector<8x16xf32>
    %164 = arith.addf %162, %163 : vector<8x16xf32>
    %165 = vector.extract_strided_slice %153 {offsets = [0, 96], sizes = [8, 16], strides = [1, 1]} : vector<8x128xf32> to vector<8x16xf32>
    %166 = arith.addf %164, %165 : vector<8x16xf32>
    %167 = vector.extract_strided_slice %153 {offsets = [0, 112], sizes = [8, 16], strides = [1, 1]} : vector<8x128xf32> to vector<8x16xf32>
    %168 = arith.addf %166, %167 : vector<8x16xf32>
    %cst_13 = arith.constant 0.000000e+00 : f32
    %169 = vector.broadcast %cst_13 : f32 to vector<8x16xf32>
    %170 = arith.subf %169, %168 : vector<8x16xf32>
    %171 = math.exp %170 : vector<8x16xf32>
    %172 = arith.addf %148, %171 : vector<8x16xf32>
    %c7_i32 = arith.constant 7 : i32
    %c7 = arith.constant 7 : index
    %c0_14 = arith.constant 0 : index
    %173 = vector.load %arg1[%c7, %c0_14] : memref<8x128xf32, #tpu.memory_space<vmem>>, vector<1x128xf32>
    %174 = vector.broadcast %173 : vector<1x128xf32> to vector<8x128xf32>
    %175 = arith.subf %3, %174 : vector<8x128xf32>
    %176 = math.absf %175 : vector<8x128xf32>
    %177 = vector.extract_strided_slice %176 {offsets = [0, 0], sizes = [8, 16], strides = [1, 1]} : vector<8x128xf32> to vector<8x16xf32>
    %178 = vector.extract_strided_slice %176 {offsets = [0, 16], sizes = [8, 16], strides = [1, 1]} : vector<8x128xf32> to vector<8x16xf32>
    %179 = arith.addf %177, %178 : vector<8x16xf32>
    %180 = vector.extract_strided_slice %176 {offsets = [0, 32], sizes = [8, 16], strides = [1, 1]} : vector<8x128xf32> to vector<8x16xf32>
    %181 = arith.addf %179, %180 : vector<8x16xf32>
    %182 = vector.extract_strided_slice %176 {offsets = [0, 48], sizes = [8, 16], strides = [1, 1]} : vector<8x128xf32> to vector<8x16xf32>
    %183 = arith.addf %181, %182 : vector<8x16xf32>
    %184 = vector.extract_strided_slice %176 {offsets = [0, 64], sizes = [8, 16], strides = [1, 1]} : vector<8x128xf32> to vector<8x16xf32>
    %185 = arith.addf %183, %184 : vector<8x16xf32>
    %186 = vector.extract_strided_slice %176 {offsets = [0, 80], sizes = [8, 16], strides = [1, 1]} : vector<8x128xf32> to vector<8x16xf32>
    %187 = arith.addf %185, %186 : vector<8x16xf32>
    %188 = vector.extract_strided_slice %176 {offsets = [0, 96], sizes = [8, 16], strides = [1, 1]} : vector<8x128xf32> to vector<8x16xf32>
    %189 = arith.addf %187, %188 : vector<8x16xf32>
    %190 = vector.extract_strided_slice %176 {offsets = [0, 112], sizes = [8, 16], strides = [1, 1]} : vector<8x128xf32> to vector<8x16xf32>
    %191 = arith.addf %189, %190 : vector<8x16xf32>
    %cst_15 = arith.constant 0.000000e+00 : f32
    %192 = vector.broadcast %cst_15 : f32 to vector<8x16xf32>
    %193 = arith.subf %192, %191 : vector<8x16xf32>
    %194 = math.exp %193 : vector<8x16xf32>
    %195 = tpu.iota {dimensions = array<i32: 0>} : vector<8x16xi32>
    %196 = vector.broadcast %1 : i32 to vector<8x16xi32>
    %197 = arith.addi %196, %195 : vector<8x16xi32>
    %c0_i32_16 = arith.constant 0 : i32
    %198 = vector.broadcast %c0_i32_16 : i32 to vector<8x16xi32>
    %199 = arith.cmpi eq, %197, %198 : vector<8x16xi32>
    %cst_17 = arith.constant 1.000000e+00 : f32
    %200 = vector.broadcast %cst_17 : f32 to vector<8x16xf32>
    %201 = arith.select %199, %200, %194 : vector<8x16xi1>, vector<8x16xf32>
    %202 = arith.addf %172, %194 : vector<8x16xf32>
    %203 = arith.subf %202, %201 : vector<8x16xf32>
    %c0_18 = arith.constant 0 : index
    %c0_19 = arith.constant 0 : index
    %204 = vector.load %arg2[%c0_18, %c0_19] : memref<8x16xf32, #tpu.memory_space<vmem>>, vector<8x16xf32>
    tpu.vector_store %arg2[%c0_18, %c0_19], %203 {strides = array<i32>} : memref<8x16xf32, #tpu.memory_space<vmem>>, vector<8x16xf32>,
    return
  }
  func.func @transform_0(%arg0: i32) -> (i32, i32) {
    %c0_i32 = arith.constant 0 : i32
    %c0_i32_0 = arith.constant 0 : i32
    %c0_i32_1 = arith.constant 0 : i32
    return %c0_i32, %c0_i32_0 : i32, i32
  }
  func.func @transform_1(%arg0: i32) -> (i32, i32) {
    %c0_i32 = arith.constant 0 : i32
    %c0_i32_0 = arith.constant 0 : i32
    return %arg0, %c0_i32 : i32, i32
  }
}

</mosaic_0001>

<llo_original>
// kernel: tpu_custom_call.1
$region0: #{tpu_custom_call.1}
  #allocation0 [shape = 'u32[]', space=smem, size = 0x4, offset = 0x4, fixed_abs, tag = 'smem constant byte address 0x4 - core index']
  #allocation1 [shape = 'u32[144,128]{1,0:T(1,128)}', space=vmem, size = 0x12000, scoped, tag = 'internal scratch']
  %s0 = inlined_call_operand.hbm [shape: f32[8,128], index: 0, kind: input, shape index: {}]
  %s1 = inlined_call_operand.hbm [shape: f32[8,16], index: 1, kind: output, shape index: {}]
  %s2 = sld [smem:[#allocation0]]
  $region18: #{tpu_custom_call.1} parent=0
    _
  %s4 = ssub.s32 1, %s2
  %s5 = scalar_select 0, %s4, %s2
  $region1: #{tpu_custom_call.1} parent=0
    #allocation2 [shape = 'u8[4096]{0}', space=vmem, size = 0x1000, scoped, tag = 'input window, operand 0, single buffered']
    #allocation3 [shape = 's32[1]{0}', space=sflag, size = 0x4, scoped, tag = 'scoped memory for tpu_custom_call.1']
    #allocation4 [shape = 's32[1]{0}', space=sflag, size = 0x4, scoped, tag = 'scoped memory for tpu_custom_call.1']
    #allocation5 [shape = 'u8[4096]{0}', space=vmem, size = 0x1000, scoped, tag = 'output window, operand 0, single buffered']
    %6 = vsyncpa [#allocation3], 0
    %7 = vsyncpa [#allocation4], 0
    // Predicated region
    $region2: #{tpu_custom_call.1} parent=1 // pred_check
      _
    $region3: #{tpu_custom_call.1} parent=1 // pred_check_branch
      %9 = sbr.rel (0) target = $region5
    $region4: #{tpu_custom_call.1} parent=1 // pred_region
      %s11 = ssub.s32 128, 128
      %12 = vsyncadd [#allocation3], %s11
      %s14 = sshll.u32 [#allocation2], 4
      %s15 = int_to_ptr.vmem [resolvable:$true] %s14
      %17 = dma.hbm_to_vmem [thread:$0]  %s0, 128, %s15, [#allocation3]
    $region5: #{tpu_custom_call.1} parent=1 // pred_fallthru
      _
    // Predicated region
    $region6: #{tpu_custom_call.1} parent=1 // pred_check
      _
    $region7: #{tpu_custom_call.1} parent=1 // pred_check_branch
      %19 = sbr.rel (0) target = $region9
    $region8: #{tpu_custom_call.1} parent=1 // pred_region
      %20 = dma.done [#allocation3], 128
    $region9: #{tpu_custom_call.1} parent=1 // pred_fallthru
      _
    %s21 = smul.u32 0, 8
    %s22 = scalar_lea.vmem [#allocation2], %s21
    %v23 = vld [vmem:[%s22] sm:$0xff]
    %v24 = vld [vmem:[#allocation2] sm:$0x1]
    %v25 = vlaneseq
    %v26 = vshrl.u32 %v25, 7
    %v27 = vsub.s32 0, %v26
    %v28 = vrot.slane %v24, %v27
    %v29 = vsub.f32 %v23, %v28
    %v30 = vand.u32 2147483647, %v29
    %32 = vrot.lane.b32.xlu0 %v30, 112
    %v33 = vpop.permute.xlu0 %32
    %v35 = vadd.f32 %v30, %v33
    %36 = vrot.lane.b32.xlu0 %v30, 96
    %v37 = vpop.permute.xlu0 %36
    %v39 = vadd.f32 %v35, %v37
    %40 = vrot.lane.b32.xlu0 %v30, 80
    %v41 = vpop.permute.xlu0 %40
    %v43 = vadd.f32 %v39, %v41
    %44 = vrot.lane.b32.xlu0 %v30, 64
    %v45 = vpop.permute.xlu0 %44
    %v47 = vadd.f32 %v43, %v45
    %48 = vrot.lane.b32.xlu0 %v30, 48
    %v49 = vpop.permute.xlu0 %48
    %v51 = vadd.f32 %v47, %v49
    %52 = vrot.lane.b32.xlu0 %v30, 32
    %v53 = vpop.permute.xlu0 %52
    %v55 = vadd.f32 %v51, %v53
    %56 = vrot.lane.b32.xlu0 %v30, 16
    %v57 = vpop.permute.xlu0 %56
    %v59 = vadd.f32 %v55, %v57
    %v60 = vsub.f32 0.0, %v59
    %v61 = vmul.f32 %v60, 1.442695
    %v62 = vpow.pop %v61
    %v63 = vadd.f32 %v62, 0.0
    %v64 = vld [vmem:[#allocation2 + $0x1] sm:$0x1]
    %v65 = vlaneseq
    %v66 = vshrl.u32 %v65, 7
    %v67 = vsub.s32 0, %v66
    %v68 = vrot.slane %v64, %v67
    %v69 = vsub.f32 %v23, %v68
    %v70 = vand.u32 2147483647, %v69
    %72 = vrot.lane.b32.xlu0 %v70, 112
    %v73 = vpop.permute.xlu0 %72
    %v75 = vadd.f32 %v70, %v73
    %76 = vrot.lane.b32.xlu0 %v70, 96
    %v77 = vpop.permute.xlu0 %76
    %v79 = vadd.f32 %v75, %v77
    %80 = vrot.lane.b32.xlu0 %v70, 80
    %v81 = vpop.permute.xlu0 %80
    %v83 = vadd.f32 %v79, %v81
    %84 = vrot.lane.b32.xlu0 %v70, 64
    %v85 = vpop.permute.xlu0 %84
    %v87 = vadd.f32 %v83, %v85
    %88 = vrot.lane.b32.xlu0 %v70, 48
    %v89 = vpop.permute.xlu0 %88
    %v91 = vadd.f32 %v87, %v89
    %92 = vrot.lane.b32.xlu0 %v70, 32
    %v93 = vpop.permute.xlu0 %92
    %v95 = vadd.f32 %v91, %v93
    %96 = vrot.lane.b32.xlu0 %v70, 16
    %v97 = vpop.permute.xlu0 %96
    %v99 = vadd.f32 %v95, %v97
    %v100 = vsub.f32 0.0, %v99
    %v101 = vmul.f32 %v100, 1.442695
    %v102 = vpow.pop %v101
    %v103 = vadd.f32 %v63, %v102
    %v104 = vld [vmem:[#allocation2 + $0x2] sm:$0x1]
    %v105 = vlaneseq
    %v106 = vshrl.u32 %v105, 7
    %v107 = vsub.s32 0, %v106
    %v108 = vrot.slane %v104, %v107
    %v109 = vsub.f32 %v23, %v108
    %v110 = vand.u32 2147483647, %v109
    %112 = vrot.lane.b32.xlu0 %v110, 112
    %v113 = vpop.permute.xlu0 %112
    %v115 = vadd.f32 %v110, %v113
    %116 = vrot.lane.b32.xlu0 %v110, 96
    %v117 = vpop.permute.xlu0 %116
    %v119 = vadd.f32 %v115, %v117
    %120 = vrot.lane.b32.xlu0 %v110, 80
    %v121 = vpop.permute.xlu0 %120
    %v123 = vadd.f32 %v119, %v121
    %124 = vrot.lane.b32.xlu0 %v110, 64
    %v125 = vpop.permute.xlu0 %124
    %v127 = vadd.f32 %v123, %v125
    %128 = vrot.lane.b32.xlu0 %v110, 48
    %v129 = vpop.permute.xlu0 %128
    %v131 = vadd.f32 %v127, %v129
    %132 = vrot.lane.b32.xlu0 %v110, 32
    %v133 = vpop.permute.xlu0 %132
    %v135 = vadd.f32 %v131, %v133
    %136 = vrot.lane.b32.xlu0 %v110, 16
    %v137 = vpop.permute.xlu0 %136
    %v139 = vadd.f32 %v135, %v137
    %v140 = vsub.f32 0.0, %v139
    %v141 = vmul.f32 %v140, 1.442695
    %v142 = vpow.pop %v141
    %v143 = vadd.f32 %v103, %v142
    %v144 = vld [vmem:[#allocation2 + $0x3] sm:$0x1]
    %v145 = vlaneseq
    %v146 = vshrl.u32 %v145, 7
    %v147 = vsub.s32 0, %v146
    %v148 = vrot.slane %v144, %v147
    %v149 = vsub.f32 %v23, %v148
    %v150 = vand.u32 2147483647, %v149
    %152 = vrot.lane.b32.xlu0 %v150, 112
    %v153 = vpop.permute.xlu0 %152
    %v155 = vadd.f32 %v150, %v153
    %156 = vrot.lane.b32.xlu0 %v150, 96
    %v157 = vpop.permute.xlu0 %156
    %v159 = vadd.f32 %v155, %v157
    %160 = vrot.lane.b32.xlu0 %v150, 80
    %v161 = vpop.permute.xlu0 %160
    %v163 = vadd.f32 %v159, %v161
    %164 = vrot.lane.b32.xlu0 %v150, 64
    %v165 = vpop.permute.xlu0 %164
    %v167 = vadd.f32 %v163, %v165
    %168 = vrot.lane.b32.xlu0 %v150, 48
    %v169 = vpop.permute.xlu0 %168
    %v171 = vadd.f32 %v167, %v169
    %172 = vrot.lane.b32.xlu0 %v150, 32
    %v173 = vpop.permute.xlu0 %172
    %v175 = vadd.f32 %v171, %v173
    %176 = vrot.lane.b32.xlu0 %v150, 16
    %v177 = vpop.permute.xlu0 %176
    %v179 = vadd.f32 %v175, %v177
    %v180 = vsub.f32 0.0, %v179
    %v181 = vmul.f32 %v180, 1.442695
    %v182 = vpow.pop %v181
    %v183 = vadd.f32 %v143, %v182
    %v184 = vld [vmem:[#allocation2 + $0x4] sm:$0x1]
    %v185 = vlaneseq
    %v186 = vshrl.u32 %v185, 7
    %v187 = vsub.s32 0, %v186
    %v188 = vrot.slane %v184, %v187
    %v189 = vsub.f32 %v23, %v188
    %v190 = vand.u32 2147483647, %v189
    %192 = vrot.lane.b32.xlu0 %v190, 112
    %v193 = vpop.permute.xlu0 %192
    %v195 = vadd.f32 %v190, %v193
    %196 = vrot.lane.b32.xlu0 %v190, 96
    %v197 = vpop.permute.xlu0 %196
    %v199 = vadd.f32 %v195, %v197
    %200 = vrot.lane.b32.xlu0 %v190, 80
    %v201 = vpop.permute.xlu0 %200
    %v203 = vadd.f32 %v199, %v201
    %204 = vrot.lane.b32.xlu0 %v190, 64
    %v205 = vpop.permute.xlu0 %204
    %v207 = vadd.f32 %v203, %v205
    %208 = vrot.lane.b32.xlu0 %v190, 48
    %v209 = vpop.permute.xlu0 %208
    %v211 = vadd.f32 %v207, %v209
    %212 = vrot.lane.b32.xlu0 %v190, 32
    %v213 = vpop.permute.xlu0 %212
    %v215 = vadd.f32 %v211, %v213
    %216 = vrot.lane.b32.xlu0 %v190, 16
    %v217 = vpop.permute.xlu0 %216
    %v219 = vadd.f32 %v215, %v217
    %v220 = vsub.f32 0.0, %v219
    %v221 = vmul.f32 %v220, 1.442695
    %v222 = vpow.pop %v221
    %v223 = vadd.f32 %v183, %v222
    %v224 = vld [vmem:[#allocation2 + $0x5] sm:$0x1]
    %v225 = vlaneseq
    %v226 = vshrl.u32 %v225, 7
    %v227 = vsub.s32 0, %v226
    %v228 = vrot.slane %v224, %v227
    %v229 = vsub.f32 %v23, %v228
    %v230 = vand.u32 2147483647, %v229
    %232 = vrot.lane.b32.xlu0 %v230, 112
    %v233 = vpop.permute.xlu0 %232
    %v235 = vadd.f32 %v230, %v233
    %236 = vrot.lane.b32.xlu0 %v230, 96
    %v237 = vpop.permute.xlu0 %236
    %v239 = vadd.f32 %v235, %v237
    %240 = vrot.lane.b32.xlu0 %v230, 80
    %v241 = vpop.permute.xlu0 %240
    %v243 = vadd.f32 %v239, %v241
    %244 = vrot.lane.b32.xlu0 %v230, 64
    %v245 = vpop.permute.xlu0 %244
    %v247 = vadd.f32 %v243, %v245
    %248 = vrot.lane.b32.xlu0 %v230, 48
    %v249 = vpop.permute.xlu0 %248
    %v251 = vadd.f32 %v247, %v249
    %252 = vrot.lane.b32.xlu0 %v230, 32
    %v253 = vpop.permute.xlu0 %252
    %v255 = vadd.f32 %v251, %v253
    %256 = vrot.lane.b32.xlu0 %v230, 16
    %v257 = vpop.permute.xlu0 %256
    %v259 = vadd.f32 %v255, %v257
    %v260 = vsub.f32 0.0, %v259
    %v261 = vmul.f32 %v260, 1.442695
    %v262 = vpow.pop %v261
    %v263 = vadd.f32 %v223, %v262
    %v264 = vld [vmem:[#allocation2 + $0x6] sm:$0x1]
    %v265 = vlaneseq
    %v266 = vshrl.u32 %v265, 7
    %v267 = vsub.s32 0, %v266
    %v268 = vrot.slane %v264, %v267
    %v269 = vsub.f32 %v23, %v268
    %v270 = vand.u32 2147483647, %v269
    %272 = vrot.lane.b32.xlu0 %v270, 112
    %v273 = vpop.permute.xlu0 %272
    %v275 = vadd.f32 %v270, %v273
    %276 = vrot.lane.b32.xlu0 %v270, 96
    %v277 = vpop.permute.xlu0 %276
    %v279 = vadd.f32 %v275, %v277
    %280 = vrot.lane.b32.xlu0 %v270, 80
    %v281 = vpop.permute.xlu0 %280
    %v283 = vadd.f32 %v279, %v281
    %284 = vrot.lane.b32.xlu0 %v270, 64
    %v285 = vpop.permute.xlu0 %284
    %v287 = vadd.f32 %v283, %v285
    %288 = vrot.lane.b32.xlu0 %v270, 48
    %v289 = vpop.permute.xlu0 %288
    %v291 = vadd.f32 %v287, %v289
    %292 = vrot.lane.b32.xlu0 %v270, 32
    %v293 = vpop.permute.xlu0 %292
    %v295 = vadd.f32 %v291, %v293
    %296 = vrot.lane.b32.xlu0 %v270, 16
    %v297 = vpop.permute.xlu0 %296
    %v299 = vadd.f32 %v295, %v297
    %v300 = vsub.f32 0.0, %v299
    %v301 = vmul.f32 %v300, 1.442695
    %v302 = vpow.pop %v301
    %v303 = vadd.f32 %v263, %v302
    %v304 = vld [vmem:[#allocation2 + $0x7] sm:$0x1]
    %v305 = vlaneseq
    %v306 = vshrl.u32 %v305, 7
    %v307 = vsub.s32 0, %v306
    %v308 = vrot.slane %v304, %v307
    %v309 = vsub.f32 %v23, %v308
    %v310 = vand.u32 2147483647, %v309
    %312 = vrot.lane.b32.xlu0 %v310, 112
    %v313 = vpop.permute.xlu0 %312
    %v315 = vadd.f32 %v310, %v313
    %316 = vrot.lane.b32.xlu0 %v310, 96
    %v317 = vpop.permute.xlu0 %316
    %v319 = vadd.f32 %v315, %v317
    %320 = vrot.lane.b32.xlu0 %v310, 80
    %v321 = vpop.permute.xlu0 %320
    %v323 = vadd.f32 %v319, %v321
    %324 = vrot.lane.b32.xlu0 %v310, 64
    %v325 = vpop.permute.xlu0 %324
    %v327 = vadd.f32 %v323, %v325
    %328 = vrot.lane.b32.xlu0 %v310, 48
    %v329 = vpop.permute.xlu0 %328
    %v331 = vadd.f32 %v327, %v329
    %332 = vrot.lane.b32.xlu0 %v310, 32
    %v333 = vpop.permute.xlu0 %332
    %v335 = vadd.f32 %v331, %v333
    %336 = vrot.lane.b32.xlu0 %v310, 16
    %v337 = vpop.permute.xlu0 %336
    %v339 = vadd.f32 %v335, %v337
    %v340 = vsub.f32 0.0, %v339
    %v341 = vmul.f32 %v340, 1.442695
    %v342 = vpow.pop %v341
    %v343 = vlaneseq
    %v344 = vshrl.u32 %v343, 7
    %v345 = vstv %s21
    %v346 = vadd.s32 %v345, %v344
    %vm347 = vcmp.eq.s32.totalorder %v346, 0
    %v348 = vsel %vm347, 1.0, %v342
    %v349 = vadd.f32 %v303, %v342
    %v350 = vsub.f32 %v349, %v348
    %vm351 = vcmask 130048
    %352 = vst.msk [vmem:[#allocation5] sm:$0xff] %vm351, %v350
    // Predicated region
    $region10: #{tpu_custom_call.1} parent=1 // pred_check
      _
    $region11: #{tpu_custom_call.1} parent=1 // pred_check_branch
      %354 = sbr.rel (0) target = $region13
    $region12: #{tpu_custom_call.1} parent=1 // pred_region
      %s356 = ssub.s32 128, 128
      %357 = vsyncadd [#allocation4], %s356
      %s359 = sshll.u32 [#allocation5], 4
      %s360 = int_to_ptr.vmem [resolvable:$true] %s359
      %362 = dma.vmem_to_hbm [thread:$0]  %s360, 128, %s1, [#allocation4]
    $region13: #{tpu_custom_call.1} parent=1 // pred_fallthru
      _
    // Predicated region
    $region14: #{tpu_custom_call.1} parent=1 // pred_check
      _
    $region15: #{tpu_custom_call.1} parent=1 // pred_check_branch
      %364 = sbr.rel (0) target = $region17
    $region16: #{tpu_custom_call.1} parent=1 // pred_region
      %365 = dma.done [#allocation4], 128
    $region17: #{tpu_custom_call.1} parent=1 // pred_fallthru
      _
    %366 = vsyncpa [#allocation3], 1
    %367 = vsyncpa [#allocation4], 1

</llo_original>
